<compile_context>
chip_gen: v5e
topology: v5e:2x2
jax: 0.10.0
libtpu: 0.0.40
codegen_flags: <defaults>
</compile_context>

<pallas_src>
import jax
import jax.numpy as jnp
from jax.experimental import pallas as pl
from jax.experimental.pallas import tpu as pltpu


# ---------------------------------------------------------------------------
# Kernels
# ---------------------------------------------------------------------------
def _fused_feat(xs_ref, xc_ref, w1s_ref, w1c_ref, bias_ref):
    """feat = ReLU(BN(Conv1x1([spatial; context]))) for one HW tile.

    BN scale is pre-folded into the weights (only the folded bias is added);
    the channel concat is fused as two MXU dots into one f32 accumulator.
    """
    feat = jnp.dot(xs_ref[0], w1s_ref[...], preferred_element_type=jnp.float32)
    feat = feat + jnp.dot(xc_ref[0], w1c_ref[...],
                          preferred_element_type=jnp.float32)
    return jnp.maximum(feat + bias_ref[...], 0.0)          # (T_HW, Cout_p) f32


def gap_kernel(xs_ref, xc_ref, w1s_ref, w1c_ref, bias_ref, psum_ref):
    # psum_ref: (1, 1, 8, Cout_p) f32 — per-tile channel partial sums.
    feat = _fused_feat(xs_ref, xc_ref, w1s_ref, w1c_ref, bias_ref)
    t_hw, cp = feat.shape
    if t_hw % 8 == 0:
        # Pure vreg (VPU) adds; the cross-sublane collapse happens once in the
        # wrapper instead of once per tile on the XLU.
        part = feat.reshape(t_hw // 8, 8, cp).sum(axis=0)
    else:
        # Full-extent fallback tile: one sublane reduce, spread across the 8
        # rows so the wrapper-side sum over them still yields the exact total.
        part = jnp.broadcast_to(
            jnp.sum(feat, axis=0, keepdims=True) * 0.125, (8, cp))
    psum_ref[0, 0] = part


def apply_kernel(xs_ref, xc_ref, w1s_ref, w1c_ref, bias_ref, rescale_ref,
                 out_ref):
    # out = feat * (1 + atten). feat is recomputed (MXU has huge slack) so no
    # O(HW*Cout_p) block stays resident in VMEM and every store is a normally
    # pipelined, lane-dense per-tile write in the output dtype.
    feat = _fused_feat(xs_ref, xc_ref, w1s_ref, w1c_ref, bias_ref)
    out_ref[0] = (feat * rescale_ref[0]).astype(out_ref.dtype)


# ---------------------------------------------------------------------------
# Wrapper helpers
# ---------------------------------------------------------------------------
def _pick_hw_tile(hw, target, multiple):
    """Largest divisor of hw that is a multiple of `multiple` and <= target.

    Falls back to the full extent; a full-dim block bypasses the (8, 128)
    tiling constraint, so the fallback is always legal.
    """
    t = min(target, hw)
    t -= t % multiple
    while t >= multiple:
        if hw % t == 0:
            return t
        t -= multiple
    return hw


def _vmem_cap_bytes():
    """Physical VMEM of the current generation (safe fallback = v7x 64 MiB)."""
    try:
        cap = getattr(pltpu.get_tpu_info(), "vmem_capacity_bytes", None)
        if cap:
            return int(cap)
    except Exception:
        pass
    return 64 << 20


def feature_fusion_module(spatial_nchw, context_nchw, params, *,
                          eps=1e-5, compute_dtype=jnp.bfloat16, hw_tile=2048):
    """NCHW in -> NCHW out; the hot path runs in two Pallas passes."""
    # TODO(synk): if the surrounding model is kept channels-last end-to-end,
    # the NCHW<->NHWC transposes below (full HBM round trips, comparable to the
    # kernel's own traffic) can be dropped entirely.
    N, Cs, H, W = spatial_nchw.shape
    Cc = context_nchw.shape[1]
    Cin = Cs + Cc
    Cout = params["w1"].shape[0]
    Cmid = params["w2"].shape[0]
    HW = H * W

    out_dtype = jnp.dtype(compute_dtype)
    act_b = out_dtype.itemsize
    sub = 16 if act_b < 4 else 8                   # sublane packing of stores
    cout_p = ((Cout + 127) // 128) * 128           # lane-dense output channels
    t_hw = _pick_hw_tile(HW, hw_tile, sub)
    assert t_hw == HW or (HW % t_hw == 0 and t_hw % sub == 0), (HW, t_hw, sub)
    n_t = HW // t_hw
    assert n_t * t_hw == HW

    # ---- trace-time weight prep (tiny tensors) ----
    scale = params["gamma"] / jnp.sqrt(params["running_var"] + eps)    # (Cout,)
    bias = params["beta"] - params["running_mean"] * scale             # (Cout,)

    w1 = params["w1"].reshape(Cout, Cin).T * scale[None, :]            # (Cin, Cout)
    w1 = jnp.pad(w1, ((0, 0), (0, cout_p - Cout)))                     # zero cols
    w1s = w1[:Cs].astype(compute_dtype)                                # (Cs, Cout_p)
    w1c = w1[Cs:].astype(compute_dtype)                                # (Cc, Cout_p)
    bias_p = jnp.pad(bias, (0, cout_p - Cout)).reshape(1, cout_p).astype(jnp.float32)

    # ---- activations: channels-last, HW flattened, compute dtype ----
    xs = jnp.transpose(spatial_nchw, (0, 2, 3, 1)).reshape(N, HW, Cs).astype(compute_dtype)
    xc = jnp.transpose(context_nchw, (0, 2, 3, 1)).reshape(N, HW, Cc).astype(compute_dtype)

    # ---- VMEM budget: only double-buffered per-tile streams + tiny weights ----
    vmem_est = (2 * t_hw * (Cs + Cc) * act_b       # double-buffered x tiles
                + 2 * t_hw * cout_p * act_b        # double-buffered out tiles
                + 2 * 8 * cout_p * 4               # psum tiles
                + Cin * cout_p * act_b             # folded conv weights
                + 4 * cout_p * 4)                  # bias + rescale rows
    vmem_limit = int(min(max(2 * vmem_est + (4 << 20), 16 << 20),
                         (_vmem_cap_bytes() * 3) // 4))

    flops_feat = 2 * N * HW * Cin * cout_p
    bytes_x = N * HW * (Cs + Cc) * act_b
    gap_cost = pl.CostEstimate(
        flops=int(flops_feat), transcendentals=0,
        bytes_accessed=int(bytes_x + N * n_t * 8 * cout_p * 4))
    apply_cost = pl.CostEstimate(
        flops=int(flops_feat + 2 * N * HW * cout_p), transcendentals=0,
        bytes_accessed=int(bytes_x + N * HW * cout_p * act_b))

    x_specs = [pl.BlockSpec((1, t_hw, Cs), lambda b, t: (b, t, 0)),
               pl.BlockSpec((1, t_hw, Cc), lambda b, t: (b, t, 0))]
    w_specs = [pl.BlockSpec((Cs, cout_p), lambda b, t: (0, 0)),
               pl.BlockSpec((Cc, cout_p), lambda b, t: (0, 0)),
               pl.BlockSpec((1, cout_p), lambda b, t: (0, 0))]

    # ---- pass 1: per-tile channel partial sums for the global average pool ----
    psum = pl.pallas_call(
        gap_kernel,
        out_shape=jax.ShapeDtypeStruct((N, n_t, 8, cout_p), jnp.float32),
        grid_spec=pltpu.PrefetchScalarGridSpec(
            num_scalar_prefetch=0,
            grid=(N, n_t),
            in_specs=x_specs + w_specs,
            out_specs=pl.BlockSpec((1, 1, 8, cout_p), lambda b, t: (b, t, 0, 0)),
        ),
        compiler_params=pltpu.CompilerParams(
            dimension_semantics=("parallel", "parallel"),
            vmem_limit_bytes=vmem_limit),
        cost_estimate=gap_cost,
    )(xs, xc, w1s, w1c, bias_p)

    # ---- tiny attention MLP, exact f32, on the unpadded channels ----
    sums = psum.sum(axis=(1, 2))[:, :Cout]                         # (N, Cout)
    avg = sums * (1.0 / HW)
    w2m = params["w2"].reshape(Cmid, Cout).astype(jnp.float32)     # (Cmid, Cout)
    w3m = params["w3"].reshape(Cout, Cmid).astype(jnp.float32)     # (Cout, Cmid)
    a1 = jnp.maximum(avg @ w2m.T, 0.0)                             # (N, Cmid)
    atten = jax.nn.sigmoid(a1 @ w3m.T)                             # (N, Cout)
    rescale = jnp.pad(1.0 + atten, ((0, 0), (0, cout_p - Cout)))   # pads -> 0
    rescale = rescale.reshape(N, 1, cout_p).astype(jnp.float32)

    # ---- pass 2: recompute feat per tile and store feat * (1 + atten) ----
    out = pl.pallas_call(
        apply_kernel,
        out_shape=jax.ShapeDtypeStruct((N, HW, cout_p), out_dtype),
        grid_spec=pltpu.PrefetchScalarGridSpec(
            num_scalar_prefetch=0,
            grid=(N, n_t),
            in_specs=x_specs + w_specs
                     + [pl.BlockSpec((1, 1, cout_p), lambda b, t: (b, 0, 0))],
            out_specs=pl.BlockSpec((1, t_hw, cout_p), lambda b, t: (b, t, 0)),
        ),
        compiler_params=pltpu.CompilerParams(
            dimension_semantics=("parallel", "parallel"),
            vmem_limit_bytes=vmem_limit),
        cost_estimate=apply_cost,
    )(xs, xc, w1s, w1c, bias_p, rescale)

    # Glue: drop channel padding (no-op when Cout is already lane-dense,
    # e.g. STDC's 256), back to NCHW.
    if cout_p != Cout:
        out = out[:, :, :Cout]
    out = out.reshape(N, H, W, Cout)
    return jnp.transpose(out, (0, 3, 1, 2))


# ---------------------------------------------------------------------------
# Pure-JAX reference of the PyTorch forward (eval-mode BN)
# ---------------------------------------------------------------------------
def reference_jax(spatial_nchw, context_nchw, params, eps=1e-5):
    w1, gamma, beta, mu, var, w2, w3 = (
        params["w1"], params["gamma"], params["beta"],
        params["running_mean"], params["running_var"],
        params["w2"], params["w3"],
    )
    x = jnp.concatenate([spatial_nchw, context_nchw], axis=1)
    feat = jnp.einsum("nchw,oc->nohw", x, w1[:, :, 0, 0])
    feat = (feat - mu[None, :, None, None]) / jnp.sqrt(var + eps)[None, :, None, None]
    feat = feat * gamma[None, :, None, None] + beta[None, :, None, None]
    feat = jnp.maximum(feat, 0.0)
    avg = jnp.mean(feat, axis=(2, 3), keepdims=True)
    a1 = jnp.maximum(jnp.einsum("nchw,oc->nohw", avg, w2[:, :, 0, 0]), 0.0)
    a2 = jnp.einsum("nchw,oc->nohw", a1, w3[:, :, 0, 0])
    atten = jax.nn.sigmoid(a2)
    return feat * atten + feat


if __name__ == "__main__":
    # Small shapes consistent with the module.
    N, H, W = 2, 16, 16
    spatial_channels, context_channels, out_channels = 16, 16, 32
    Cin = spatial_channels + context_channels
    Cmid = out_channels // 4

    key = jax.random.PRNGKey(0)
    ks = jax.random.split(key, 8)
    spatial = jax.random.normal(ks[0], (N, spatial_channels, H, W), jnp.float32)
    context = jax.random.normal(ks[1], (N, context_channels, H, W), jnp.float32)

    params = {
        # pw_conv: Conv2d(Cin, Cout, 1, bias=False) + BatchNorm2d(Cout) (+ReLU)
        "w1": jax.random.normal(ks[2], (out_channels, Cin, 1, 1), jnp.float32) * 0.1,
        "gamma": 1.0 + 0.1 * jax.random.normal(ks[3], (out_channels,), jnp.float32),
        "beta": 0.1 * jax.random.normal(ks[4], (out_channels,), jnp.float32),
        "running_mean": 0.05 * jax.random.normal(ks[5], (out_channels,), jnp.float32),
        "running_var": jnp.abs(1.0 + 0.1 * jax.random.normal(ks[6], (out_channels,), jnp.float32)),
        # attention_block convs (both bias=False, no BN on the first)
        "w2": jax.random.normal(ks[7], (Cmid, out_channels, 1, 1), jnp.float32) * 0.1,
        "w3": jax.random.normal(jax.random.fold_in(key, 99),
                                (out_channels, Cmid, 1, 1), jnp.float32) * 0.1,
    }

    ref = reference_jax(spatial, context, params)

    # Exact path: f32 end-to-end, multi-tile HW (256 -> 2 tiles of 128).
    out_f32 = jax.block_until_ready(
        feature_fusion_module(spatial, context, params,
                              compute_dtype=jnp.float32, hw_tile=128))
    assert out_f32.shape == (N, out_channels, H, W)
    assert jnp.allclose(out_f32, ref, atol=1e-4, rtol=1e-4), "f32 mismatch vs reference"

    # Fast path: bf16 activations/weights/output with f32 accumulation,
    # multi-tile HW (256 -> 4 tiles of 64, multiple of 16 for packed stores).
    out_bf16 = jax.block_until_ready(
        feature_fusion_module(spatial, context, params,
                              compute_dtype=jnp.bfloat16, hw_tile=64))
    assert out_bf16.shape == (N, out_channels, H, W)
    assert jnp.allclose(out_bf16.astype(jnp.float32), ref,
                        atol=5e-2, rtol=5e-2), "bf16 mismatch vs reference"

    # Default config (single full-extent tile per image).
    out_default = jax.block_until_ready(
        feature_fusion_module(spatial, context, params))
    assert out_default.shape == (N, out_channels, H, W)
    assert jnp.allclose(out_default.astype(jnp.float32), ref,
                        atol=5e-2, rtol=5e-2), "default-path mismatch vs reference"

    print("KERNEL_OK")
</pallas_src>

<mosaic_0001>
module attributes {stable_mosaic.version = 11 : i64} {
  func.func @gap_kernel(%arg0: i32, %arg1: i32, %arg2: memref<1x128x16xf32, #tpu.memory_space<vmem>>, %arg3: memref<1x128x16xf32, #tpu.memory_space<vmem>>, %arg4: memref<16x128xf32, #tpu.memory_space<vmem>>, %arg5: memref<16x128xf32, #tpu.memory_space<vmem>>, %arg6: memref<1x128xf32, #tpu.memory_space<vmem>>, %arg7: memref<1x1x8x128xf32, #tpu.memory_space<vmem>>) attributes {dimension_semantics = [#tpu.dimension_semantics<parallel>, #tpu.dimension_semantics<parallel>], iteration_bounds = array<i64: 2, 2>, scalar_prefetch = 0 : i64, scratch_operands = 0 : i64, tpu.core_type = #tpu.core_type<tc>, window_params = [{transform_indices = @transform_0, window_bounds = array<i64: 1, 128, 16>}, {transform_indices = @transform_1, window_bounds = array<i64: 1, 128, 16>}, {pipeline_mode = #tpu.pipeline_mode<synchronous>, transform_indices = @transform_2, window_bounds = array<i64: 16, 128>}, {pipeline_mode = #tpu.pipeline_mode<synchronous>, transform_indices = @transform_3, window_bounds = array<i64: 16, 128>}, {pipeline_mode = #tpu.pipeline_mode<synchronous>, transform_indices = @transform_4, window_bounds = array<i64: 1, 128>}, {transform_indices = @transform_5, window_bounds = array<i64: 1, 1, 8, 128>}]} {
    %c0 = arith.constant 0 : index
    %c0_0 = arith.constant 0 : index
    %c0_1 = arith.constant 0 : index
    %0 = vector.load %arg2[%c0, %c0_0, %c0_1] : memref<1x128x16xf32, #tpu.memory_space<vmem>>, vector<1x128x16xf32>
    %1 = vector.shape_cast %0 : vector<1x128x16xf32> to vector<128x16xf32>
    %c0_2 = arith.constant 0 : index
    %c0_3 = arith.constant 0 : index
    %2 = vector.load %arg4[%c0_2, %c0_3] : memref<16x128xf32, #tpu.memory_space<vmem>>, vector<16x128xf32>
    %cst = arith.constant dense<0.000000e+00> : vector<128x128xf32>
    %3 = tpu.matmul %1, %2, %cst {dimension_numbers = #tpu.dot_dimension_numbers<[1], [0], [0], [1], [0, 0, 1, 1], [], []>} : vector<128x16xf32>, vector<16x128xf32>, vector<128x128xf32> -> vector<128x128xf32>
    %c0_4 = arith.constant 0 : index
    %c0_5 = arith.constant 0 : index
    %c0_6 = arith.constant 0 : index
    %4 = vector.load %arg3[%c0_4, %c0_5, %c0_6] : memref<1x128x16xf32, #tpu.memory_space<vmem>>, vector<1x128x16xf32>
    %5 = vector.shape_cast %4 : vector<1x128x16xf32> to vector<128x16xf32>
    %c0_7 = arith.constant 0 : index
    %c0_8 = arith.constant 0 : index
    %6 = vector.load %arg5[%c0_7, %c0_8] : memref<16x128xf32, #tpu.memory_space<vmem>>, vector<16x128xf32>
    %cst_9 = arith.constant dense<0.000000e+00> : vector<128x128xf32>
    %7 = tpu.matmul %5, %6, %cst_9 {dimension_numbers = #tpu.dot_dimension_numbers<[1], [0], [0], [1], [0, 0, 1, 1], [], []>} : vector<128x16xf32>, vector<16x128xf32>, vector<128x128xf32> -> vector<128x128xf32>
    %8 = arith.addf %3, %7 : vector<128x128xf32>
    %c0_10 = arith.constant 0 : index
    %c0_11 = arith.constant 0 : index
    %9 = vector.load %arg6[%c0_10, %c0_11] : memref<1x128xf32, #tpu.memory_space<vmem>>, vector<1x128xf32>
    %10 = vector.broadcast %9 : vector<1x128xf32> to vector<128x128xf32>
    %11 = arith.addf %8, %10 : vector<128x128xf32>
    %cst_12 = arith.constant 0.000000e+00 : f32
    %12 = vector.broadcast %cst_12 : f32 to vector<128x128xf32>
    %13 = arith.maximumf %11, %12 : vector<128x128xf32>
    %14 = vector.shape_cast %13 : vector<128x128xf32> to vector<16x8x128xf32>
    %cst_13 = arith.constant dense<0.000000e+00> : vector<8x128xf32>
    %15 = vector.multi_reduction <add>, %14, %cst_13 [0] : vector<16x8x128xf32> to vector<8x128xf32>
    %c0_14 = arith.constant 0 : index
    %c0_15 = arith.constant 0 : index
    %c0_16 = arith.constant 0 : index
    %c0_17 = arith.constant 0 : index
    %16 = vector.load %arg7[%c0_14, %c0_15, %c0_16, %c0_17] : memref<1x1x8x128xf32, #tpu.memory_space<vmem>>, vector<1x1x8x128xf32>
    %17 = vector.shape_cast %16 : vector<1x1x8x128xf32> to vector<8x128xf32>
    %18 = vector.shape_cast %15 : vector<8x128xf32> to vector<1x1x8x128xf32>
    tpu.vector_store %arg7[%c0_14, %c0_15, %c0_16, %c0_17], %18 {strides = array<i32>} : memref<1x1x8x128xf32, #tpu.memory_space<vmem>>, vector<1x1x8x128xf32>,
    return
  }
  func.func @transform_0(%arg0: i32, %arg1: i32) -> (i32, i32, i32) {
    %c0_i32 = arith.constant 0 : i32
    %c0_i32_0 = arith.constant 0 : i32
    return %arg0, %arg1, %c0_i32 : i32, i32, i32
  }
  func.func @transform_1(%arg0: i32, %arg1: i32) -> (i32, i32, i32) {
    %c0_i32 = arith.constant 0 : i32
    %c0_i32_0 = arith.constant 0 : i32
    return %arg0, %arg1, %c0_i32 : i32, i32, i32
  }
  func.func @transform_2(%arg0: i32, %arg1: i32) -> (i32, i32) {
    %c0_i32 = arith.constant 0 : i32
    %c0_i32_0 = arith.constant 0 : i32
    %c0_i32_1 = arith.constant 0 : i32
    return %c0_i32, %c0_i32_0 : i32, i32
  }
  func.func @transform_3(%arg0: i32, %arg1: i32) -> (i32, i32) {
    %c0_i32 = arith.constant 0 : i32
    %c0_i32_0 = arith.constant 0 : i32
    %c0_i32_1 = arith.constant 0 : i32
    return %c0_i32, %c0_i32_0 : i32, i32
  }
  func.func @transform_4(%arg0: i32, %arg1: i32) -> (i32, i32) {
    %c0_i32 = arith.constant 0 : i32
    %c0_i32_0 = arith.constant 0 : i32
    %c0_i32_1 = arith.constant 0 : i32
    return %c0_i32, %c0_i32_0 : i32, i32
  }
  func.func @transform_5(%arg0: i32, %arg1: i32) -> (i32, i32, i32, i32) {
    %c0_i32 = arith.constant 0 : i32
    %c0_i32_0 = arith.constant 0 : i32
    %c0_i32_1 = arith.constant 0 : i32
    return %arg0, %arg1, %c0_i32, %c0_i32_0 : i32, i32, i32, i32
  }
}

</mosaic_0001>

<llo_original>
// kernel: tpu_custom_call.1
$region0: #{tpu_custom_call.1}
  #allocation0 [shape = 'u32[]', space=smem, size = 0x4, offset = 0x4, fixed_abs, tag = 'smem constant byte address 0x4 - core index']
  #allocation1 [shape = 'u32[72,128]{1,0:T(1,128)}', space=vmem, size = 0x9000, scoped, tag = 'internal scratch']
  %s0 = inlined_call_operand.vmem [shape: f32[2,256,16], index: 0, kind: input, shape index: {}]
  %s1 = inlined_call_operand.vmem [shape: f32[2,256,16], index: 1, kind: input, shape index: {}]
  %s2 = inlined_call_operand.vmem [shape: f32[16,128], index: 2, kind: input, shape index: {}]
  %s3 = inlined_call_operand.vmem [shape: f32[16,128], index: 3, kind: input, shape index: {}]
  %s4 = inlined_call_operand.vmem [shape: f32[1,128], index: 4, kind: input, shape index: {}]
  %s5 = inlined_call_operand.hbm [shape: f32[2,2,8,128], index: 5, kind: output, shape index: {}]
  %s6 = sld [smem:[#allocation0]]
  $region53: #{tpu_custom_call.1} parent=0
    _
  %s8 = ssub.s32 1, %s6
  %s9 = scalar_select 0, %s8, %s6
  $region1: #{tpu_custom_call.1} parent=0
    #allocation2 [shape = 'u8[8192]{0}', space=vmem, size = 0x2000, scoped, tag = 'output window, operand 0']
    #allocation3 [shape = 's32[2]{0}', space=sflag, size = 0x8, scoped, tag = 'scoped memory for tpu_custom_call.1']
    %10 = vsyncpa [#allocation3], 0
    %s11 = scalar_lea.sflag [#allocation3], 1
    %12 = vsyncpa %s11, 0
    loop: start=0, step=1, limit=6
    $region2: #{tpu_custom_call.1} parent=1 // loop_pre_header
      _
    $region3: #{tpu_custom_call.1} parent=1 // loop_header
      %s14 = sphi 0, %s18
      %p15 = scmp.ge.s32.totalorder %s14, 6
      %s21 = sphi 0, %s33
      %s22 = sphi 0, %s29
      %s23 = sphi 0, %s21
      %s24 = sphi 0, %s22
      %s25 = sphi 0, %s23
      %s26 = sphi 0, %s24
      %s38 = sphi 0, %s40
      %s41 = sphi 0, %s38
      %s42 = sphi 0, %s41
      %s58 = sphi 0, %s42
      %s66 = sphi 0, %s68
      %s69 = sphi 0, %s66
      %s70 = sphi 0, %s69
      %s86 = sphi 0, %s70
      %s90 = sphi 0, %s90
      %s92 = sphi 0, %s90
      %s93 = sphi 0, %s92
      %s107 = sphi 0, %s93
      %s111 = sphi 0, %s111
      %s113 = sphi 0, %s111
      %s114 = sphi 0, %s113
      %s128 = sphi 0, %s114
      %s132 = sphi 0, %s132
      %s134 = sphi 0, %s132
      %s135 = sphi 0, %s134
      %s149 = sphi 0, %s135
      %s157 = sphi 0, %s159
      %s160 = sphi 0, %s157
      %s161 = sphi 0, %s160
      %s177 = sphi 0, %s161
    $region4: #{tpu_custom_call.1} parent=1 // loop_header_branch
      %17 = sbr.rel (%p15) target = $region8
    $region5: #{tpu_custom_call.1} parent=1 // loop_body
      %s19 = ssub.s32 %s14, 1
      %s20 = ssub.s32 %s14, 2
      %s27 = sadd.s32 1, %s22
      %p28 = scmp.ge.s32.totalorder %s27, 2
      %s29 = scalar_select %p28, 0, %s27
      %s30 = sadd.s32 1, %s21
      %s31 = scalar_select %p28, %s30, %s21
      %p32 = scmp.ge.s32.totalorder %s31, 2
      %s33 = scalar_select %p32, 0, %s31
      %s34 = ssub.s32 %s21, %s33
      %s35 = ssub.s32 %s22, %s29
      %s36 = sor.u32 %s34, %s35
      %p37 = scmp.eq.s32.totalorder %s36, 0
      %s39 = sadd.s32 %s38, 1
      %s40 = scalar_select %p37, %s38, %s39
      %p43 = pneg %p37
      %p44 = scmp.eq.s32.totalorder %s14, 3
      %p45 = por %p43, %p44
      %p46 = scmp.ne.s32.totalorder %s38, %s41
      %p47 = scmp.eq.s32.totalorder %s14, 0
      %p48 = por %p46, %p47
      %p49 = scmp.ne.s32.totalorder %s38, %s41
      %p50 = scmp.eq.s32.totalorder %s19, 3
      %p51 = por %p49, %p50
      %p52 = scmp.ne.s32.totalorder %s41, %s42
      %p53 = scmp.eq.s32.totalorder %s19, 0
      %p54 = por %p52, %p53
      %p55 = scmp.ne.s32.totalorder %s41, %s42
      %p56 = scmp.eq.s32.totalorder %s20, 3
      %p57 = por %p55, %p56
      %p59 = scmp.ne.s32.totalorder %s42, %s58
      %p60 = scmp.eq.s32.totalorder %s20, 0
      %p61 = por %p59, %p60
      %s62 = ssub.s32 %s21, %s33
      %s63 = ssub.s32 %s22, %s29
      %s64 = sor.u32 %s62, %s63
      %p65 = scmp.eq.s32.totalorder %s64, 0
      %s67 = sadd.s32 %s66, 1
      %s68 = scalar_select %p65, %s66, %s67
      %p71 = pneg %p65
      %p72 = scmp.eq.s32.totalorder %s14, 3
      %p73 = por %p71, %p72
      %p74 = scmp.ne.s32.totalorder %s66, %s69
      %p75 = scmp.eq.s32.totalorder %s14, 0
      %p76 = por %p74, %p75
      %p77 = scmp.ne.s32.totalorder %s66, %s69
      %p78 = scmp.eq.s32.totalorder %s19, 3
      %p79 = por %p77, %p78
      %p80 = scmp.ne.s32.totalorder %s69, %s70
      %p81 = scmp.eq.s32.totalorder %s19, 0
      %p82 = por %p80, %p81
      %p83 = scmp.ne.s32.totalorder %s69, %s70
      %p84 = scmp.eq.s32.totalorder %s20, 3
      %p85 = por %p83, %p84
      %p87 = scmp.ne.s32.totalorder %s70, %s86
      %p88 = scmp.eq.s32.totalorder %s20, 0
      %p89 = por %p87, %p88
      %s91 = sadd.s32 %s90, 1
      %p94 = scmp.eq.s32.totalorder %s14, 3
      %p95 = scmp.ne.s32.totalorder %s90, %s92
      %p96 = scmp.eq.s32.totalorder %s14, 0
      %p97 = por %p95, %p96
      %p98 = scmp.ne.s32.totalorder %s90, %s92
      %p99 = scmp.eq.s32.totalorder %s19, 3
      %p100 = por %p98, %p99
      %p101 = scmp.ne.s32.totalorder %s92, %s93
      %p102 = scmp.eq.s32.totalorder %s19, 0
      %p103 = por %p101, %p102
      %p104 = scmp.ne.s32.totalorder %s92, %s93
      %p105 = scmp.eq.s32.totalorder %s20, 3
      %p106 = por %p104, %p105
      %p108 = scmp.ne.s32.totalorder %s93, %s107
      %p109 = scmp.eq.s32.totalorder %s20, 0
      %p110 = por %p108, %p109
      %s112 = sadd.s32 %s111, 1
      %p115 = scmp.eq.s32.totalorder %s14, 3
      %p116 = scmp.ne.s32.totalorder %s111, %s113
      %p117 = scmp.eq.s32.totalorder %s14, 0
      %p118 = por %p116, %p117
      %p119 = scmp.ne.s32.totalorder %s111, %s113
      %p120 = scmp.eq.s32.totalorder %s19, 3
      %p121 = por %p119, %p120
      %p122 = scmp.ne.s32.totalorder %s113, %s114
      %p123 = scmp.eq.s32.totalorder %s19, 0
      %p124 = por %p122, %p123
      %p125 = scmp.ne.s32.totalorder %s113, %s114
      %p126 = scmp.eq.s32.totalorder %s20, 3
      %p127 = por %p125, %p126
      %p129 = scmp.ne.s32.totalorder %s114, %s128
      %p130 = scmp.eq.s32.totalorder %s20, 0
      %p131 = por %p129, %p130
      %s133 = sadd.s32 %s132, 1
      %p136 = scmp.eq.s32.totalorder %s14, 3
      %p137 = scmp.ne.s32.totalorder %s132, %s134
      %p138 = scmp.eq.s32.totalorder %s14, 0
      %p139 = por %p137, %p138
      %p140 = scmp.ne.s32.totalorder %s132, %s134
      %p141 = scmp.eq.s32.totalorder %s19, 3
      %p142 = por %p140, %p141
      %p143 = scmp.ne.s32.totalorder %s134, %s135
      %p144 = scmp.eq.s32.totalorder %s19, 0
      %p145 = por %p143, %p144
      %p146 = scmp.ne.s32.totalorder %s134, %s135
      %p147 = scmp.eq.s32.totalorder %s20, 3
      %p148 = por %p146, %p147
      %p150 = scmp.ne.s32.totalorder %s135, %s149
      %p151 = scmp.eq.s32.totalorder %s20, 0
      %p152 = por %p150, %p151
      %s153 = ssub.s32 %s21, %s33
      %s154 = ssub.s32 %s22, %s29
      %s155 = sor.u32 %s153, %s154
      %p156 = scmp.eq.s32.totalorder %s155, 0
      %s158 = sadd.s32 %s157, 1
      %s159 = scalar_select %p156, %s157, %s158
      %p162 = pneg %p156
      %p163 = scmp.eq.s32.totalorder %s14, 3
      %p164 = por %p162, %p163
      %p165 = scmp.ne.s32.totalorder %s157, %s160
      %p166 = scmp.eq.s32.totalorder %s14, 0
      %p167 = por %p165, %p166
      %p168 = scmp.ne.s32.totalorder %s157, %s160
      %p169 = scmp.eq.s32.totalorder %s19, 3
      %p170 = por %p168, %p169
      %p171 = scmp.ne.s32.totalorder %s160, %s161
      %p172 = scmp.eq.s32.totalorder %s19, 0
      %p173 = por %p171, %p172
      %p174 = scmp.ne.s32.totalorder %s160, %s161
      %p175 = scmp.eq.s32.totalorder %s20, 3
      %p176 = por %p174, %p175
      %p178 = scmp.ne.s32.totalorder %s161, %s177
      %p179 = scmp.eq.s32.totalorder %s20, 0
      %p180 = por %p178, %p179
      %p181 = scmp.le.s32.totalorder 1, %s14
      %p182 = scmp.lt.s32.totalorder %s14, 5
      %p183 = pnand %p181, %p182
      %p184 = pneg %p183
      // Predicated region
      $region9: #{tpu_custom_call.1} parent=5 // pred_check
        _
      $region10: #{tpu_custom_call.1} parent=5 // pred_check_branch
        %186 = sbr.rel (%p183) target = $region12
      $region11: #{tpu_custom_call.1} parent=5 // pred_region
        %s187 = ssub.s32 %s14, 1
        // Predicated region
        $region13: #{tpu_custom_call.1} parent=11 // pred_check
          %p188 = pneg %p103
        $region14: #{tpu_custom_call.1} parent=11 // pred_check_branch
          %190 = sbr.rel (%p188) target = $region16
        $region15: #{tpu_custom_call.1} parent=11 // pred_region
          _
        $region16: #{tpu_custom_call.1} parent=11 // pred_fallthru
          _
        // Predicated region
        $region17: #{tpu_custom_call.1} parent=11 // pred_check
          %p191 = pneg %p124
        $region18: #{tpu_custom_call.1} parent=11 // pred_check_branch
          %193 = sbr.rel (%p191) target = $region20
        $region19: #{tpu_custom_call.1} parent=11 // pred_region
          _
        $region20: #{tpu_custom_call.1} parent=11 // pred_fallthru
          _
        // Predicated region
        $region21: #{tpu_custom_call.1} parent=11 // pred_check
          %p194 = pneg %p145
        $region22: #{tpu_custom_call.1} parent=11 // pred_check_branch
          %196 = sbr.rel (%p194) target = $region24
        $region23: #{tpu_custom_call.1} parent=11 // pred_region
          _
        $region24: #{tpu_custom_call.1} parent=11 // pred_fallthru
          _
      $region12: #{tpu_custom_call.1} parent=5 // pred_fallthru
        _
      %p197 = scmp.lt.s32.totalorder %s14, 4
      // Predicated region
      $region25: #{tpu_custom_call.1} parent=5 // pred_check
        %p198 = pneg %p197
      $region26: #{tpu_custom_call.1} parent=5 // pred_check_branch
        %200 = sbr.rel (%p198) target = $region28
      $region27: #{tpu_custom_call.1} parent=5 // pred_region
        // Predicated region
        $region29: #{tpu_custom_call.1} parent=27 // pred_check
          %p201 = pneg %p48
        $region30: #{tpu_custom_call.1} parent=27 // pred_check_branch
          %203 = sbr.rel (%p201) target = $region32
        $region31: #{tpu_custom_call.1} parent=27 // pred_region
          %s204 = smul.u32 16, %s22
          %p205 = scmp.lt.s32.totalorder %s21, 1
          %s206 = scalar_select %p205, %s21, 1
          %p207 = scmp.lt.s32.totalorder %s204, 31
          %s208 = scalar_select %p207, %s204, 31
          %s209 = smul.addr %s206, 32
          %s210 = sadd.s32 %s208, %s209
          %s211 = smul.addr %s210, 8
          %s212 = scalar_lea.vmem %s0, %s211
          %s213 = smul.u32 16, %s22
        $region32: #{tpu_custom_call.1} parent=27 // pred_fallthru
          _
        // Predicated region
        $region33: #{tpu_custom_call.1} parent=27 // pred_check
          %p214 = pneg %p76
        $region34: #{tpu_custom_call.1} parent=27 // pred_check_branch
          %216 = sbr.rel (%p214) target = $region36
        $region35: #{tpu_custom_call.1} parent=27 // pred_region
          %s217 = smul.u32 16, %s22
          %p218 = scmp.lt.s32.totalorder %s21, 1
          %s219 = scalar_select %p218, %s21, 1
          %p220 = scmp.lt.s32.totalorder %s217, 31
          %s221 = scalar_select %p220, %s217, 31
          %s222 = smul.addr %s219, 32
          %s223 = sadd.s32 %s221, %s222
          %s224 = smul.addr %s223, 8
          %s225 = scalar_lea.vmem %s1, %s224
          %s226 = smul.u32 16, %s22
        $region36: #{tpu_custom_call.1} parent=27 // pred_fallthru
          _
      $region28: #{tpu_custom_call.1} parent=5 // pred_fallthru
        _
      %p227 = scmp.le.s32.totalorder 1, %s14
      %p228 = scmp.lt.s32.totalorder %s14, 5
      %p229 = pnand %p227, %p228
      %p230 = pneg %p229
      // Predicated region
      $region37: #{tpu_custom_call.1} parent=5 // pred_check
        _
      $region38: #{tpu_custom_call.1} parent=5 // pred_check_branch
        %232 = sbr.rel (%p229) target = $region40
      $region39: #{tpu_custom_call.1} parent=5 // pred_region
        %s233 = ssub.s32 %s14, 1
        %s234 = smul.u32 16, %s24
        %p235 = scmp.lt.s32.totalorder %s23, 1
        %s236 = scalar_select %p235, %s23, 1
        %p237 = scmp.lt.s32.totalorder %s234, 31
        %s238 = scalar_select %p237, %s234, 31
        %s239 = smul.addr %s236, 32
        %s240 = sadd.s32 %s238, %s239
        %s241 = smul.addr %s240, 8
        %s242 = scalar_lea.vmem %s0, %s241
        %p243 = pneg %p54
        %p244 = pneg %p51
        %s245 = smul.u32 16, %s24
        %p246 = scmp.lt.s32.totalorder %s23, 1
        %s247 = scalar_select %p246, %s23, 1
        %p248 = scmp.lt.s32.totalorder %s245, 31
        %s249 = scalar_select %p248, %s245, 31
        %s250 = smul.addr %s247, 32
        %s251 = sadd.s32 %s249, %s250
        %s252 = smul.addr %s251, 8
        %s253 = scalar_lea.vmem %s1, %s252
        %p254 = pneg %p82
        %p255 = pneg %p79
        %p256 = pneg %p103
        %p257 = pneg %p100
        %p258 = pneg %p124
        %p259 = pneg %p121
        %p260 = pneg %p145
        %p261 = pneg %p142
        %p262 = pneg %p173
        %p263 = pneg %p170
        %s264 = sand.u32 %s160, 1
        %s265 = scalar_lea.sflag [#allocation3], %s264
        %s266 = sand.u32 %s160, 1
        %s267 = smul.addr %s266, 8
        %s268 = scalar_lea.vmem [#allocation2], %s267
        %s269 = smul.u32 16, %s24
        %p270 = scmp.lt.s32.totalorder %s23, 1
        %s271 = scalar_select %p270, %s23, 1
        %p272 = scmp.lt.s32.totalorder %s269, 31
        %s273 = scalar_select %p272, %s269, 31
        %s274 = smul.addr %s271, 32
        %s275 = sadd.s32 %s273, %s274
        %s276 = smul.addr %s275, 8
        %s277 = scalar_lea.vmem %s0, %s276
        %s278 = smul.u32 16, %s24
        %s279 = smul.u32 16, %s24
        %p280 = scmp.lt.s32.totalorder %s23, 1
        %s281 = scalar_select %p280, %s23, 1
        %p282 = scmp.lt.s32.totalorder %s279, 31
        %s283 = scalar_select %p282, %s279, 31
        %s284 = smul.addr %s281, 32
        %s285 = sadd.s32 %s283, %s284
        %s286 = smul.addr %s285, 8
        %s287 = scalar_lea.vmem %s1, %s286
        %s288 = smul.u32 16, %s24
        %v289 = vld [vmem:[%s277] sm:$0xff]
        %v290 = vld [vmem:[%s277 + $0x8] sm:$0xff]
        %v291 = vld [vmem:[%s277 + $0x10] sm:$0xff]
        %v292 = vld [vmem:[%s277 + $0x18] sm:$0xff]
        %v293 = vld [vmem:[%s277 + $0x20] sm:$0xff]
        %v294 = vld [vmem:[%s277 + $0x28] sm:$0xff]
        %v295 = vld [vmem:[%s277 + $0x30] sm:$0xff]
        %v296 = vld [vmem:[%s277 + $0x38] sm:$0xff]
        %v297 = vld [vmem:[%s277 + $0x40] sm:$0xff]
        %v298 = vld [vmem:[%s277 + $0x48] sm:$0xff]
        %v299 = vld [vmem:[%s277 + $0x50] sm:$0xff]
        %v300 = vld [vmem:[%s277 + $0x58] sm:$0xff]
        %v301 = vld [vmem:[%s277 + $0x60] sm:$0xff]
        %v302 = vld [vmem:[%s277 + $0x68] sm:$0xff]
        %v303 = vld [vmem:[%s277 + $0x70] sm:$0xff]
        %v304 = vld [vmem:[%s277 + $0x78] sm:$0xff]
        %v305 = vld [vmem:[%s2] sm:$0xff]
        %v306 = vld [vmem:[%s2 + $0x8] sm:$0xff]
        %v307 = vld [vmem:[%s287] sm:$0xff]
        %v308 = vld [vmem:[%s287 + $0x8] sm:$0xff]
        %v309 = vld [vmem:[%s287 + $0x10] sm:$0xff]
        %v310 = vld [vmem:[%s287 + $0x18] sm:$0xff]
        %v311 = vld [vmem:[%s287 + $0x20] sm:$0xff]
        %v312 = vld [vmem:[%s287 + $0x28] sm:$0xff]
        %v313 = vld [vmem:[%s287 + $0x30] sm:$0xff]
        %v314 = vld [vmem:[%s287 + $0x38] sm:$0xff]
        %v315 = vld [vmem:[%s287 + $0x40] sm:$0xff]
        %v316 = vld [vmem:[%s287 + $0x48] sm:$0xff]
        %v317 = vld [vmem:[%s287 + $0x50] sm:$0xff]
        %v318 = vld [vmem:[%s287 + $0x58] sm:$0xff]
        %v319 = vld [vmem:[%s287 + $0x60] sm:$0xff]
        %v320 = vld [vmem:[%s287 + $0x68] sm:$0xff]
        %v321 = vld [vmem:[%s287 + $0x70] sm:$0xff]
        %v322 = vld [vmem:[%s287 + $0x78] sm:$0xff]
        %v323 = vld [vmem:[%s3] sm:$0xff]
        %v324 = vld [vmem:[%s3 + $0x8] sm:$0xff]
        %vm325 = vcmask 130048
        %v327 = vsel %vm325, %v307, 0
        %v330 = vsel %vm325, %v308, 0
        %v333 = vsel %vm325, %v309, 0
        %v336 = vsel %vm325, %v310, 0
        %v339 = vsel %vm325, %v311, 0
        %v342 = vsel %vm325, %v312, 0
        %v345 = vsel %vm325, %v313, 0
        %v348 = vsel %vm325, %v314, 0
        %v351 = vsel %vm325, %v315, 0
        %v354 = vsel %vm325, %v316, 0
        %v357 = vsel %vm325, %v317, 0
        %v360 = vsel %vm325, %v318, 0
        %v363 = vsel %vm325, %v319, 0
        %v366 = vsel %vm325, %v320, 0
        %v369 = vsel %vm325, %v321, 0
        %v372 = vsel %vm325, %v322, 0
        %374 = vmatpush.msra.mxu0 0.0
        %375 = vmatpush.msra.mxu0 0.0
        %376 = vmatpush.msra.mxu0 0.0
        %377 = vmatpush.msra.mxu0 0.0
        %378 = vmatpush.msra.mxu0 0.0
        %379 = vmatpush.msra.mxu0 0.0
        %380 = vmatpush.msra.mxu0 0.0
        %381 = vmatpush.msra.mxu0 0.0
        %382 = vmatpush.msra.mxu0 0.0
        %383 = vmatpush.msra.mxu0 0.0
        %384 = vmatpush.msra.mxu0 0.0
        %385 = vmatpush.msra.mxu0 0.0
        %386 = vmatpush.msra.mxu0 0.0
        %387 = vmatpush.msra.mxu0 0.0
        %388 = vmatpush.msra.mxu0 %v324
        %389 = vmatpush.msra.mxu0 %v323
        %390 = vmatmul.f32.gmra.mxu0 %v327
        %v391 = vpop.f32.mrf.mxu0
        %v392 = vadd.f32 0.0, %v391
        %393 = vmatmul.f32.gmra.mxu0 %v330
        %v394 = vpop.f32.mrf.mxu0
        %v395 = vadd.f32 0.0, %v394
        %396 = vmatmul.f32.gmra.mxu0 %v333
        %v397 = vpop.f32.mrf.mxu0
        %v398 = vadd.f32 0.0, %v397
        %399 = vmatmul.f32.gmra.mxu0 %v336
        %v400 = vpop.f32.mrf.mxu0
        %v401 = vadd.f32 0.0, %v400
        %402 = vmatmul.f32.gmra.mxu0 %v339
        %v403 = vpop.f32.mrf.mxu0
        %v404 = vadd.f32 0.0, %v403
        %405 = vmatmul.f32.gmra.mxu0 %v342
        %v406 = vpop.f32.mrf.mxu0
        %v407 = vadd.f32 0.0, %v406
        %408 = vmatmul.f32.gmra.mxu0 %v345
        %v409 = vpop.f32.mrf.mxu0
        %v410 = vadd.f32 0.0, %v409
        %411 = vmatmul.f32.gmra.mxu0 %v348
        %v412 = vpop.f32.mrf.mxu0
        %v413 = vadd.f32 0.0, %v412
        %414 = vmatmul.f32.gmra.mxu0 %v351
        %v415 = vpop.f32.mrf.mxu0
        %v416 = vadd.f32 0.0, %v415
        %417 = vmatmul.f32.gmra.mxu0 %v354
        %v418 = vpop.f32.mrf.mxu0
        %v419 = vadd.f32 0.0, %v418
        %420 = vmatmul.f32.gmra.mxu0 %v357
        %v421 = vpop.f32.mrf.mxu0
        %v422 = vadd.f32 0.0, %v421
        %423 = vmatmul.f32.gmra.mxu0 %v360
        %v424 = vpop.f32.mrf.mxu0
        %v425 = vadd.f32 0.0, %v424
        %426 = vmatmul.f32.gmra.mxu0 %v363
        %v427 = vpop.f32.mrf.mxu0
        %v428 = vadd.f32 0.0, %v427
        %429 = vmatmul.f32.gmra.mxu0 %v366
        %v430 = vpop.f32.mrf.mxu0
        %v431 = vadd.f32 0.0, %v430
        %432 = vmatmul.f32.gmra.mxu0 %v369
        %v433 = vpop.f32.mrf.mxu0
        %v434 = vadd.f32 0.0, %v433
        %435 = vmatmul.f32.gmra.mxu0 %v372
        %v436 = vpop.f32.mrf.mxu0
        %v437 = vadd.f32 0.0, %v436
        %438 = vdwg.mxu0
        %v440 = vsel %vm325, %v289, 0
        %v443 = vsel %vm325, %v290, 0
        %v446 = vsel %vm325, %v291, 0
        %v449 = vsel %vm325, %v292, 0
        %v452 = vsel %vm325, %v293, 0
        %v455 = vsel %vm325, %v294, 0
        %v458 = vsel %vm325, %v295, 0
        %v461 = vsel %vm325, %v296, 0
        %v464 = vsel %vm325, %v297, 0
        %v467 = vsel %vm325, %v298, 0
        %v470 = vsel %vm325, %v299, 0
        %v473 = vsel %vm325, %v300, 0
        %v476 = vsel %vm325, %v301, 0
        %v479 = vsel %vm325, %v302, 0
        %v482 = vsel %vm325, %v303, 0
        %v485 = vsel %vm325, %v304, 0
        %487 = vmatpush.msra.mxu0 0.0
        %488 = vmatpush.msra.mxu0 0.0
        %489 = vmatpush.msra.mxu0 0.0
        %490 = vmatpush.msra.mxu0 0.0
        %491 = vmatpush.msra.mxu0 0.0
        %492 = vmatpush.msra.mxu0 0.0
        %493 = vmatpush.msra.mxu0 0.0
        %494 = vmatpush.msra.mxu0 0.0
        %495 = vmatpush.msra.mxu0 0.0
        %496 = vmatpush.msra.mxu0 0.0
        %497 = vmatpush.msra.mxu0 0.0
        %498 = vmatpush.msra.mxu0 0.0
        %499 = vmatpush.msra.mxu0 0.0
        %500 = vmatpush.msra.mxu0 0.0
        %501 = vmatpush.msra.mxu0 %v306
        %502 = vmatpush.msra.mxu0 %v305
        %503 = vmatmul.f32.gmra.mxu0 %v440
        %v504 = vpop.f32.mrf.mxu0
        %v505 = vadd.f32 %v392, %v504
        %506 = vmatmul.f32.gmra.mxu0 %v443
        %v507 = vpop.f32.mrf.mxu0
        %v508 = vadd.f32 %v395, %v507
        %509 = vmatmul.f32.gmra.mxu0 %v446
        %v510 = vpop.f32.mrf.mxu0
        %v511 = vadd.f32 %v398, %v510
        %512 = vmatmul.f32.gmra.mxu0 %v449
        %v513 = vpop.f32.mrf.mxu0
        %v514 = vadd.f32 %v401, %v513
        %515 = vmatmul.f32.gmra.mxu0 %v452
        %v516 = vpop.f32.mrf.mxu0
        %v517 = vadd.f32 %v404, %v516
        %518 = vmatmul.f32.gmra.mxu0 %v455
        %v519 = vpop.f32.mrf.mxu0
        %v520 = vadd.f32 %v407, %v519
        %521 = vmatmul.f32.gmra.mxu0 %v458
        %v522 = vpop.f32.mrf.mxu0
        %v523 = vadd.f32 %v410, %v522
        %524 = vmatmul.f32.gmra.mxu0 %v461
        %v525 = vpop.f32.mrf.mxu0
        %v526 = vadd.f32 %v413, %v525
        %527 = vmatmul.f32.gmra.mxu0 %v464
        %v528 = vpop.f32.mrf.mxu0
        %v529 = vadd.f32 %v416, %v528
        %530 = vmatmul.f32.gmra.mxu0 %v467
        %v531 = vpop.f32.mrf.mxu0
        %v532 = vadd.f32 %v419, %v531
        %533 = vmatmul.f32.gmra.mxu0 %v470
        %v534 = vpop.f32.mrf.mxu0
        %v535 = vadd.f32 %v422, %v534
        %536 = vmatmul.f32.gmra.mxu0 %v473
        %v537 = vpop.f32.mrf.mxu0
        %v538 = vadd.f32 %v425, %v537
        %539 = vmatmul.f32.gmra.mxu0 %v476
        %v540 = vpop.f32.mrf.mxu0
        %v541 = vadd.f32 %v428, %v540
        %542 = vmatmul.f32.gmra.mxu0 %v479
        %v543 = vpop.f32.mrf.mxu0
        %v544 = vadd.f32 %v431, %v543
        %545 = vmatmul.f32.gmra.mxu0 %v482
        %v546 = vpop.f32.mrf.mxu0
        %v547 = vadd.f32 %v434, %v546
        %548 = vmatmul.f32.gmra.mxu0 %v485
        %v549 = vpop.f32.mrf.mxu0
        %v550 = vadd.f32 %v437, %v549
        %551 = vdwg.mxu0
        %v552 = vld [vmem:[%s4] sm:$0x1]
        %v554 = vperm.slane %v552, 0
        %v556 = vadd.f32 %v505, %v554
        %v557 = vadd.f32 %v508, %v554
        %v558 = vadd.f32 %v511, %v554
        %v559 = vadd.f32 %v514, %v554
        %v560 = vadd.f32 %v517, %v554
        %v561 = vadd.f32 %v520, %v554
        %v562 = vadd.f32 %v523, %v554
        %v563 = vadd.f32 %v526, %v554
        %v564 = vadd.f32 %v529, %v554
        %v565 = vadd.f32 %v532, %v554
        %v566 = vadd.f32 %v535, %v554
        %v567 = vadd.f32 %v538, %v554
        %v568 = vadd.f32 %v541, %v554
        %v569 = vadd.f32 %v544, %v554
        %v570 = vadd.f32 %v547, %v554
        %v571 = vadd.f32 %v550, %v554
        %v572 = vmax.f32 %v556, 0.0
        %v573 = vmax.f32 %v557, 0.0
        %v574 = vmax.f32 %v558, 0.0
        %v575 = vmax.f32 %v559, 0.0
        %v576 = vmax.f32 %v560, 0.0
        %v577 = vmax.f32 %v561, 0.0
        %v578 = vmax.f32 %v562, 0.0
        %v579 = vmax.f32 %v563, 0.0
        %v580 = vmax.f32 %v564, 0.0
        %v581 = vmax.f32 %v565, 0.0
        %v582 = vmax.f32 %v566, 0.0
        %v583 = vmax.f32 %v567, 0.0
        %v584 = vmax.f32 %v568, 0.0
        %v585 = vmax.f32 %v569, 0.0
        %v586 = vmax.f32 %v570, 0.0
        %v587 = vmax.f32 %v571, 0.0
        %v588 = vadd.f32 %v572, %v573
        %v589 = vadd.f32 %v588, %v574
        %v590 = vadd.f32 %v589, %v575
        %v591 = vadd.f32 %v590, %v576
        %v592 = vadd.f32 %v591, %v577
        %v593 = vadd.f32 %v592, %v578
        %v594 = vadd.f32 %v593, %v579
        %v595 = vadd.f32 %v594, %v580
        %v596 = vadd.f32 %v595, %v581
        %v597 = vadd.f32 %v596, %v582
        %v598 = vadd.f32 %v597, %v583
        %v599 = vadd.f32 %v598, %v584
        %v600 = vadd.f32 %v599, %v585
        %v601 = vadd.f32 %v600, %v586
        %v602 = vadd.f32 %v601, %v587
        %603 = vst [vmem:[%s268] sm:$0xff] %v602
        %s604 = sand.u32 %s160, 1
        %s605 = scalar_lea.sflag [#allocation3], %s604
        %s606 = sand.u32 %s160, 1
        %s607 = smul.addr %s606, 8
        %s608 = scalar_lea.vmem [#allocation2], %s607
        // Predicated region
        $region41: #{tpu_custom_call.1} parent=39 // pred_check
          %p609 = pneg %p170
        $region42: #{tpu_custom_call.1} parent=39 // pred_check_branch
          %611 = sbr.rel (%p609) target = $region44
        $region43: #{tpu_custom_call.1} parent=39 // pred_region
          %613 = vsyncadd %s605, 0
          %s614 = smul.addr %s23, 2
          %s615 = sadd.s32 %s24, %s614
          %s616 = smul.addr %s615, 8
          %s617 = scalar_lea.hbm %s5, %s616
          %s619 = sshll.u32 %s608, 4
          %s620 = int_to_ptr.vmem [resolvable:$true] %s619
          %s621 = sshll.u32 %s617, 4
          %s622 = int_to_ptr.hbm [resolvable:$true] %s621
          %624 = dma.vmem_to_hbm [thread:$0]  %s620, 128, %s622, %s605
        $region44: #{tpu_custom_call.1} parent=39 // pred_fallthru
          _
      $region40: #{tpu_custom_call.1} parent=5 // pred_fallthru
        _
      %p625 = scmp.le.s32.totalorder 2, %s14
      // Predicated region
      $region45: #{tpu_custom_call.1} parent=5 // pred_check
        %p626 = pneg %p625
      $region46: #{tpu_custom_call.1} parent=5 // pred_check_branch
        %628 = sbr.rel (%p626) target = $region48
      $region47: #{tpu_custom_call.1} parent=5 // pred_region
        %s629 = ssub.s32 %s14, 2
        // Predicated region
        $region49: #{tpu_custom_call.1} parent=47 // pred_check
          %p630 = pneg %p176
        $region50: #{tpu_custom_call.1} parent=47 // pred_check_branch
          %632 = sbr.rel (%p630) target = $region52
        $region51: #{tpu_custom_call.1} parent=47 // pred_region
          %s633 = sand.u32 %s161, 1
          %s634 = scalar_lea.sflag [#allocation3], %s633
          %s635 = sand.u32 %s161, 1
          %s636 = smul.addr %s635, 8
          %s637 = scalar_lea.vmem [#allocation2], %s636
          %639 = dma.done %s634, 128
        $region52: #{tpu_custom_call.1} parent=47 // pred_fallthru
          _
      $region48: #{tpu_custom_call.1} parent=5 // pred_fallthru
        _
    $region6: #{tpu_custom_call.1} parent=1 // loop_footer
      %s18 = sadd.s32 1, %s14
    $region7: #{tpu_custom_call.1} parent=1 // loop_footer_branch
      %13 = sbr.rel target = $region3
    $region8: #{tpu_custom_call.1} parent=1 // loop_exit
      _
    %640 = vsyncpa [#allocation3], 1
    %s641 = scalar_lea.sflag [#allocation3], 1
    %642 = vsyncpa %s641, 1

</llo_original>
